<compile_context>
chip_gen: v5e
topology: v5e:2x2
jax: 0.10.0
libtpu: 0.0.40
codegen_flags: <defaults>
</compile_context>

<pallas_src>
import functools

import numpy as np
import jax
import jax.numpy as jnp
from jax.experimental import pallas as pl
from jax.experimental.pallas import tpu as pltpu


_VMEM = pl.BlockSpec(memory_space=pltpu.MemorySpace.VMEM)
_SMEM = pl.BlockSpec(memory_space=pltpu.MemorySpace.SMEM)


# ---------------------------------------------------------------------------
# In-kernel helpers
# ---------------------------------------------------------------------------
def _dot(a, b):
    return jnp.dot(a, b, preferred_element_type=jnp.float32)


def _layernorm(y, eps=1e-5):
    mean = jnp.mean(y, axis=-1, keepdims=True)
    var = jnp.mean((y - mean) ** 2, axis=-1, keepdims=True)
    return (y - mean) * jax.lax.rsqrt(var + eps)


# ---------------------------------------------------------------------------
# Single fused Encoder kernel
# ---------------------------------------------------------------------------
def _encoder_kernel(adj_ref, x_ref, member_ref, cls_ref, sel_ref, valid_ref,
                    selb_ref, con_ref, y_ref, eps_ref,
                    gcnw_ref, spw_ref, hw_ref, vec_ref,
                    dseq_ref, amvo_ref, mol_ref, kl_ref, *, F, H):
    # Bias / gain / seg vectors live in one slab; each at an 8-aligned row.
    def vr(i, w):
        return vec_ref[i * 8:i * 8 + 1, 0:w]

    # ---- MolecularFeatureExtractor: 3x (GCNConv + ReLU) --------------------
    adj = adj_ref[...]
    w1 = gcnw_ref[0:F, 0:2 * F]
    w2 = gcnw_ref[F:3 * F, 0:3 * F]
    w3 = gcnw_ref[3 * F:6 * F, 0:H]
    h = jnp.maximum(_dot(adj, _dot(x_ref[...], w1)) + vr(0, 2 * F), 0.0)
    h = jnp.maximum(_dot(adj, _dot(h, w2)) + vr(1, 3 * F), 0.0)
    g = jnp.maximum(_dot(adj, _dot(h, w3)) + vr(2, H), 0.0)        # [N, H]

    # global_max_pool: g >= 0 post-ReLU, so membership masking by multiply is
    # exact for non-empty graphs and safe (no -inf sentinel) for empty ones.
    member = member_ref[...]                                        # [B, N]
    pooled = jnp.max(member[:, :, None] * g[None, :, :], axis=1)    # [B, H]

    # smiles_proj: Linear(384->H) + ReLU + LayerNorm (Dropout = identity, eval)
    chem = jnp.maximum(_dot(cls_ref[...], spw_ref[...]) + vr(3, H), 0.0)
    chem = _layernorm(chem) * vr(4, H) + vr(5, H)

    # fusion: Linear(2H->H) on concat([pooled, chem]) with the concat removed.
    fu_w_g = hw_ref[0:H, 0:H]
    fu_w_c = hw_ref[H:2 * H, 0:H]
    fused = _dot(pooled, fu_w_g) + _dot(chem, fu_w_c) + vr(6, H)
    fused = jnp.maximum(fused, 0.0)
    fused = _layernorm(fused) * vr(7, H) + vr(8, H)
    mol_ref[...] = fused

    # ---- process_p: pad_sequence(padding_value=-999) + pp_seg_encoding -----
    valid = valid_ref[...]                                          # [L*B, 1]
    d_pad = _dot(sel_ref[...], g) + (1.0 - valid) * jnp.float32(-999.0)
    d_seq = d_pad + vr(12, H)
    dseq_ref[...] = d_seq

    # ---- mean / var heads (first layers packed [H,2H], second block-diag) --
    mv_w1 = hw_ref[3 * H:4 * H, 0:2 * H]
    mv_w2 = hw_ref[4 * H:6 * H, 0:2 * H]                            # block-diag
    hmv = jnp.maximum(_dot(d_seq, mv_w1) + vr(9, 2 * H), 0.0)
    mv = _dot(hmv, mv_w2) + vr(10, 2 * H)
    mu = mv[:, 0:H]
    lv = mv[:, H:2 * H]

    # ---- reparameterize (+ cond(con) + a) and KL (matches reference: padded
    #      rows are included in the sum, exactly like the PyTorch module) ----
    zlv = -jnp.abs(lv)
    kl = -0.5 * jnp.sum(1.0 + zlv - mu * mu - jnp.exp(zlv)) * jnp.float32(5e-5)
    z = mu + jnp.exp(zlv * 0.5) * eps_ref[...]

    cond_w = hw_ref[2 * H:3 * H, 0:H]
    con_emb = _dot(con_ref[...], cond_w) + vr(11, H)                # [B, H]
    z = z + _dot(selb_ref[...], con_emb + y_ref[...])               # y: [B,1]
    amvo_ref[...] = z
    kl_ref[0, 0] = kl                                               # SMEM scalar


def encoder_call(adj, x, member, cls, sel, valid, sel_b, con, y_col, eps,
                 slabs, F, H):
    B = member.shape[0]
    LB = sel.shape[0]
    args = (adj, x, member, cls, sel, valid, sel_b, con, y_col, eps,
            slabs['gcn_w'], slabs['sp_w'], slabs['hw'], slabs['vec'])
    return pl.pallas_call(
        functools.partial(_encoder_kernel, F=F, H=H),
        out_shape=(jax.ShapeDtypeStruct((LB, H), jnp.float32),   # d_sequence
                   jax.ShapeDtypeStruct((LB, H), jnp.float32),   # amvo
                   jax.ShapeDtypeStruct((B, H), jnp.float32),    # mol_features
                   jax.ShapeDtypeStruct((1, 1), jnp.float32)),   # kl
        in_specs=[_VMEM] * len(args),
        out_specs=(_VMEM, _VMEM, _VMEM, _SMEM),
    )(*args)


# ---------------------------------------------------------------------------
# Host-side (vectorized numpy) graph bookkeeping — computed once, no XLA loops.
# ---------------------------------------------------------------------------
def graph_structures(node_counts):
    counts = np.asarray(node_counts, np.int64)
    B = len(counts)
    N = int(counts.sum())
    L = int(counts.max())
    offsets = np.concatenate([[0], np.cumsum(counts)[:-1]])
    gid = np.repeat(np.arange(B), counts)                       # node -> graph id

    # chain edges within each graph + self loops, GCN-normalized D^-1/2(A+I)D^-1/2
    a = np.eye(N, dtype=np.float32)
    i = np.arange(N - 1)[gid[:-1] == gid[1:]]
    a[i, i + 1] = 1.0
    a[i + 1, i] = 1.0
    dinv = 1.0 / np.sqrt(a.sum(1))
    adj_norm = a * dinv[:, None] * dinv[None, :]

    member = (gid[None, :] == np.arange(B)[:, None]).astype(np.float32)   # [B, N]

    # padded-sequence bookkeeping, row r = l*B + b  (batch_first=False layout)
    l_idx = np.repeat(np.arange(L), B)
    b_idx = np.tile(np.arange(B), L)
    valid = (l_idx < counts[b_idx]).astype(np.float32)
    node_idx = offsets[b_idx] + np.minimum(l_idx, counts[b_idx] - 1)
    sel = np.zeros((L * B, N), np.float32)
    sel[np.arange(L * B), node_idx] = valid                     # one-hot (0 for pads)
    sel_b = np.zeros((L * B, B), np.float32)
    sel_b[np.arange(L * B), b_idx] = 1.0
    # padding mask derived from counts (equivalent to the -999 equality check,
    # since post-ReLU node features are never -999).
    padding_mask = (valid.reshape(L, B).T == 0.0)               # [B, L], True = pad

    return dict(adj=jnp.asarray(adj_norm), member=jnp.asarray(member),
                sel=jnp.asarray(sel), sel_b=jnp.asarray(sel_b),
                valid=jnp.asarray(valid.reshape(L * B, 1)),
                mask=jnp.asarray(padding_mask), L=L, B=B, N=N)


# ---------------------------------------------------------------------------
# Parameters
# ---------------------------------------------------------------------------
def init_params(key, F, H):
    def lin_init(k, fan_in, fan_out):
        kw, kb = jax.random.split(k)
        lim = 1.0 / jnp.sqrt(jnp.float32(fan_in))
        w = jax.random.uniform(kw, (fan_in, fan_out), jnp.float32, -lim, lim)
        b = jax.random.uniform(kb, (fan_out,), jnp.float32, -lim, lim)
        return w, b

    keys = jax.random.split(key, 12)
    p = {}
    p['gcn1_w'], p['gcn1_b'] = lin_init(keys[0], F, 2 * F)
    p['gcn2_w'], p['gcn2_b'] = lin_init(keys[1], 2 * F, 3 * F)
    p['gcn3_w'], p['gcn3_b'] = lin_init(keys[2], 3 * F, H)
    p['sp_w'], p['sp_b'] = lin_init(keys[3], 384, H)
    p['sp_g'] = jnp.ones((H,), jnp.float32)
    p['sp_beta'] = jnp.zeros((H,), jnp.float32)
    p['fu_w'], p['fu_b'] = lin_init(keys[4], 2 * H, H)
    p['fu_g'] = jnp.ones((H,), jnp.float32)
    p['fu_beta'] = jnp.zeros((H,), jnp.float32)
    p['mean_w1'], p['mean_b1'] = lin_init(keys[5], H, H)
    p['mean_w2'], p['mean_b2'] = lin_init(keys[6], H, H)
    p['var_w1'], p['var_b1'] = lin_init(keys[7], H, H)
    p['var_w2'], p['var_b2'] = lin_init(keys[8], H, H)
    p['cond_w'], p['cond_b'] = lin_init(keys[9], H, H)
    p['pp_seg'] = jax.random.normal(keys[10], (H,), jnp.float32)
    return p


def pack_params(p, F, H):
    """One-time repack of all parameters into 4 kernel-ready slabs."""
    W2 = 2 * H
    Wg = max(3 * F, H)

    # GCN weights: rows [0:F]=W1, [F:3F]=W2, [3F:6F]=W3 (column zero-padded).
    gcn_w = jnp.zeros((6 * F, Wg), jnp.float32)
    gcn_w = gcn_w.at[0:F, 0:2 * F].set(p['gcn1_w'])
    gcn_w = gcn_w.at[F:3 * F, 0:3 * F].set(p['gcn2_w'])
    gcn_w = gcn_w.at[3 * F:6 * F, 0:H].set(p['gcn3_w'])

    # H-class weights: fusion (split halves), cond, packed mean/var layer-1,
    # block-diagonal mean/var layer-2.
    hw = jnp.zeros((6 * H, W2), jnp.float32)
    hw = hw.at[0:H, 0:H].set(p['fu_w'][:H, :])
    hw = hw.at[H:2 * H, 0:H].set(p['fu_w'][H:, :])
    hw = hw.at[2 * H:3 * H, 0:H].set(p['cond_w'])
    hw = hw.at[3 * H:4 * H, 0:W2].set(
        jnp.concatenate([p['mean_w1'], p['var_w1']], axis=1))
    mvw2 = jnp.zeros((W2, W2), jnp.float32)
    mvw2 = mvw2.at[0:H, 0:H].set(p['mean_w2'])
    mvw2 = mvw2.at[H:W2, H:W2].set(p['var_w2'])
    hw = hw.at[4 * H:6 * H, 0:W2].set(mvw2)

    # All 1-D bias/gain/beta/seg vectors, each at an 8-aligned sublane row.
    vec = jnp.zeros((13 * 8, W2), jnp.float32)
    rows = [p['gcn1_b'], p['gcn2_b'], p['gcn3_b'],
            p['sp_b'], p['sp_g'], p['sp_beta'],
            p['fu_b'], p['fu_g'], p['fu_beta'],
            jnp.concatenate([p['mean_b1'], p['var_b1']]),
            jnp.concatenate([p['mean_b2'], p['var_b2']]),
            p['cond_b'], p['pp_seg']]
    for i, v in enumerate(rows):
        vec = vec.at[i * 8, 0:v.shape[0]].set(v)

    return {'gcn_w': gcn_w, 'sp_w': p['sp_w'], 'hw': hw, 'vec': vec}


# ---------------------------------------------------------------------------
# Encoder forward (single pallas_call)
# ---------------------------------------------------------------------------
@functools.partial(jax.jit, static_argnames=('L', 'B', 'F', 'H'))
def encoder_forward(slabs, x_nodes, adj, member, sel, sel_b, valid,
                    chemberta_cls, con, y, eps, *, L, B, F, H):
    d_flat, amvo_flat, mol_features, kl = encoder_call(
        adj, x_nodes, member, chemberta_cls, sel, valid, sel_b, con,
        y.reshape(-1, 1), eps, slabs, F, H)
    d_sequence = d_flat.reshape(L, B, H)
    amvo = amvo_flat.reshape(L, B, H)
    return d_sequence, amvo, mol_features, kl[0, 0]


# ---------------------------------------------------------------------------
if __name__ == "__main__":
    drug_features = 8
    hidden_dim = 32
    node_counts = [5, 7]              # data.c_size
    B = len(node_counts)
    N_total = sum(node_counts)

    key = jax.random.PRNGKey(0)
    k_par, k_x, k_chem, k_con, k_y, k_eps = jax.random.split(key, 6)

    params = init_params(k_par, drug_features, hidden_dim)
    slabs = pack_params(params, drug_features, hidden_dim)
    st = graph_structures(node_counts)

    x_nodes = jax.random.normal(k_x, (N_total, drug_features), jnp.float32)   # data.x
    # TODO(synk): ChemBERTa-77M-MTR transformer + tokenizer have no Pallas
    # equivalent here; a deterministic synthetic [B, 384] CLS embedding stands
    # in for `chemberta(**inputs).last_hidden_state[:, 0, :]`.
    chemberta_cls = jax.random.normal(k_chem, (B, 384), jnp.float32)
    con = jax.random.normal(k_con, (B, hidden_dim), jnp.float32)              # `con`
    y = jax.random.normal(k_y, (B,), jnp.float32)                             # data.y
    eps = jax.random.normal(k_eps, (st['L'] * B, hidden_dim), jnp.float32)    # randn_like

    d_sequence, amvo, mol_features, kl_loss = encoder_forward(
        slabs, x_nodes, st['adj'], st['member'], st['sel'], st['sel_b'],
        st['valid'], chemberta_cls, con, y, eps,
        L=st['L'], B=B, F=drug_features, H=hidden_dim)
    mask = st['mask']
    jax.block_until_ready((d_sequence, amvo, mol_features, kl_loss))

    assert d_sequence.shape == (max(node_counts), B, hidden_dim)
    assert amvo.shape == (max(node_counts), B, hidden_dim)
    assert mask.shape == (B, max(node_counts)) and mask.dtype == jnp.bool_
    assert mol_features.shape == (B, hidden_dim)
    assert kl_loss.shape == ()
    assert bool(jnp.all(jnp.isfinite(amvo)))
    assert bool(jnp.all(jnp.isfinite(mol_features)))
    assert bool(jnp.isfinite(kl_loss))

    print("KERNEL_OK")
</pallas_src>

<mosaic_0001>
module attributes {stable_mosaic.version = 11 : i64} {
  func.func @_encoder_kernel(%arg0: memref<12x12xf32, #tpu.memory_space<vmem>>, %arg1: memref<12x8xf32, #tpu.memory_space<vmem>>, %arg2: memref<2x12xf32, #tpu.memory_space<vmem>>, %arg3: memref<2x384xf32, #tpu.memory_space<vmem>>, %arg4: memref<14x12xf32, #tpu.memory_space<vmem>>, %arg5: memref<14x1xf32, #tpu.memory_space<vmem>>, %arg6: memref<14x2xf32, #tpu.memory_space<vmem>>, %arg7: memref<2x32xf32, #tpu.memory_space<vmem>>, %arg8: memref<2x1xf32, #tpu.memory_space<vmem>>, %arg9: memref<14x32xf32, #tpu.memory_space<vmem>>, %arg10: memref<48x32xf32, #tpu.memory_space<vmem>>, %arg11: memref<384x32xf32, #tpu.memory_space<vmem>>, %arg12: memref<192x64xf32, #tpu.memory_space<vmem>>, %arg13: memref<104x64xf32, #tpu.memory_space<vmem>>, %arg14: memref<14x32xf32, #tpu.memory_space<vmem>>, %arg15: memref<14x32xf32, #tpu.memory_space<vmem>>, %arg16: memref<2x32xf32, #tpu.memory_space<vmem>>, %arg17: memref<1x1xf32, #tpu.memory_space<smem>>) attributes {dimension_semantics = [], scalar_prefetch = 0 : i64, scratch_operands = 0 : i64, tpu.core_type = #tpu.core_type<tc>} {
    %c0 = arith.constant 0 : index
    %c0_0 = arith.constant 0 : index
    %0 = vector.load %arg0[%c0, %c0_0] : memref<12x12xf32, #tpu.memory_space<vmem>>, vector<12x12xf32>
    %c0_1 = arith.constant 0 : index
    %c0_2 = arith.constant 0 : index
    %1 = vector.load %arg10[%c0_1, %c0_2] : memref<48x32xf32, #tpu.memory_space<vmem>>, vector<8x16xf32>
    %c8 = arith.constant 8 : index
    %c0_3 = arith.constant 0 : index
    %2 = vector.load %arg10[%c8, %c0_3] : memref<48x32xf32, #tpu.memory_space<vmem>>, vector<16x24xf32>
    %c24 = arith.constant 24 : index
    %c0_4 = arith.constant 0 : index
    %3 = vector.load %arg10[%c24, %c0_4] : memref<48x32xf32, #tpu.memory_space<vmem>>, vector<24x32xf32>
    %c0_5 = arith.constant 0 : index
    %c0_6 = arith.constant 0 : index
    %4 = vector.load %arg1[%c0_5, %c0_6] : memref<12x8xf32, #tpu.memory_space<vmem>>, vector<12x8xf32>
    %cst = arith.constant dense<0.000000e+00> : vector<12x16xf32>
    %5 = tpu.matmul %4, %1, %cst {dimension_numbers = #tpu.dot_dimension_numbers<[1], [0], [0], [1], [0, 0, 1, 1], [], []>} : vector<12x8xf32>, vector<8x16xf32>, vector<12x16xf32> -> vector<12x16xf32>
    %cst_7 = arith.constant dense<0.000000e+00> : vector<12x16xf32>
    %6 = tpu.matmul %0, %5, %cst_7 {dimension_numbers = #tpu.dot_dimension_numbers<[1], [0], [0], [1], [0, 0, 1, 1], [], []>} : vector<12x12xf32>, vector<12x16xf32>, vector<12x16xf32> -> vector<12x16xf32>
    %c0_8 = arith.constant 0 : index
    %c0_9 = arith.constant 0 : index
    %7 = vector.load %arg13[%c0_8, %c0_9] : memref<104x64xf32, #tpu.memory_space<vmem>>, vector<1x16xf32>
    %8 = vector.broadcast %7 : vector<1x16xf32> to vector<12x16xf32>
    %9 = arith.addf %6, %8 : vector<12x16xf32>
    %cst_10 = arith.constant 0.000000e+00 : f32
    %10 = vector.broadcast %cst_10 : f32 to vector<12x16xf32>
    %11 = arith.maximumf %9, %10 : vector<12x16xf32>
    %cst_11 = arith.constant dense<0.000000e+00> : vector<12x24xf32>
    %12 = tpu.matmul %11, %2, %cst_11 {dimension_numbers = #tpu.dot_dimension_numbers<[1], [0], [0], [1], [0, 0, 1, 1], [], []>} : vector<12x16xf32>, vector<16x24xf32>, vector<12x24xf32> -> vector<12x24xf32>
    %cst_12 = arith.constant dense<0.000000e+00> : vector<12x24xf32>
    %13 = tpu.matmul %0, %12, %cst_12 {dimension_numbers = #tpu.dot_dimension_numbers<[1], [0], [0], [1], [0, 0, 1, 1], [], []>} : vector<12x12xf32>, vector<12x24xf32>, vector<12x24xf32> -> vector<12x24xf32>
    %c8_13 = arith.constant 8 : index
    %c0_14 = arith.constant 0 : index
    %14 = vector.load %arg13[%c8_13, %c0_14] : memref<104x64xf32, #tpu.memory_space<vmem>>, vector<1x24xf32>
    %15 = vector.broadcast %14 : vector<1x24xf32> to vector<12x24xf32>
    %16 = arith.addf %13, %15 : vector<12x24xf32>
    %cst_15 = arith.constant 0.000000e+00 : f32
    %17 = vector.broadcast %cst_15 : f32 to vector<12x24xf32>
    %18 = arith.maximumf %16, %17 : vector<12x24xf32>
    %cst_16 = arith.constant dense<0.000000e+00> : vector<12x32xf32>
    %19 = tpu.matmul %18, %3, %cst_16 {dimension_numbers = #tpu.dot_dimension_numbers<[1], [0], [0], [1], [0, 0, 1, 1], [], []>} : vector<12x24xf32>, vector<24x32xf32>, vector<12x32xf32> -> vector<12x32xf32>
    %cst_17 = arith.constant dense<0.000000e+00> : vector<12x32xf32>
    %20 = tpu.matmul %0, %19, %cst_17 {dimension_numbers = #tpu.dot_dimension_numbers<[1], [0], [0], [1], [0, 0, 1, 1], [], []>} : vector<12x12xf32>, vector<12x32xf32>, vector<12x32xf32> -> vector<12x32xf32>
    %c16 = arith.constant 16 : index
    %c0_18 = arith.constant 0 : index
    %21 = vector.load %arg13[%c16, %c0_18] : memref<104x64xf32, #tpu.memory_space<vmem>>, vector<1x32xf32>
    %22 = vector.broadcast %21 : vector<1x32xf32> to vector<12x32xf32>
    %23 = arith.addf %20, %22 : vector<12x32xf32>
    %cst_19 = arith.constant 0.000000e+00 : f32
    %24 = vector.broadcast %cst_19 : f32 to vector<12x32xf32>
    %25 = arith.maximumf %23, %24 : vector<12x32xf32>
    %c0_20 = arith.constant 0 : index
    %c0_21 = arith.constant 0 : index
    %26 = vector.load %arg2[%c0_20, %c0_21] : memref<2x12xf32, #tpu.memory_space<vmem>>, vector<2x12xf32>
    %27 = vector.shape_cast %26 : vector<2x12xf32> to vector<2x12x1xf32>
    %28 = vector.shape_cast %25 : vector<12x32xf32> to vector<1x12x32xf32>
    %29 = vector.broadcast %27 : vector<2x12x1xf32> to vector<2x12x32xf32>
    %30 = vector.broadcast %28 : vector<1x12x32xf32> to vector<2x12x32xf32>
    %31 = arith.mulf %29, %30 : vector<2x12x32xf32>
    %cst_22 = arith.constant dense<0xFF800000> : vector<2x32xf32>
    %32 = vector.multi_reduction <maximumf>, %31, %cst_22 [1] : vector<2x12x32xf32> to vector<2x32xf32>
    %c0_23 = arith.constant 0 : index
    %c0_24 = arith.constant 0 : index
    %33 = vector.load %arg3[%c0_23, %c0_24] : memref<2x384xf32, #tpu.memory_space<vmem>>, vector<2x384xf32>
    %c0_25 = arith.constant 0 : index
    %c0_26 = arith.constant 0 : index
    %34 = vector.load %arg11[%c0_25, %c0_26] : memref<384x32xf32, #tpu.memory_space<vmem>>, vector<384x32xf32>
    %cst_27 = arith.constant dense<0.000000e+00> : vector<2x32xf32>
    %35 = tpu.matmul %33, %34, %cst_27 {dimension_numbers = #tpu.dot_dimension_numbers<[1], [0], [0], [1], [0, 0, 1, 1], [], []>} : vector<2x384xf32>, vector<384x32xf32>, vector<2x32xf32> -> vector<2x32xf32>
    %c24_28 = arith.constant 24 : index
    %c0_29 = arith.constant 0 : index
    %36 = vector.load %arg13[%c24_28, %c0_29] : memref<104x64xf32, #tpu.memory_space<vmem>>, vector<1x32xf32>
    %37 = vector.broadcast %36 : vector<1x32xf32> to vector<2x32xf32>
    %38 = arith.addf %35, %37 : vector<2x32xf32>
    %cst_30 = arith.constant 0.000000e+00 : f32
    %39 = vector.broadcast %cst_30 : f32 to vector<2x32xf32>
    %40 = arith.maximumf %38, %39 : vector<2x32xf32>
    %cst_31 = arith.constant dense<0.000000e+00> : vector<2xf32>
    %41 = vector.multi_reduction <add>, %40, %cst_31 [1] : vector<2x32xf32> to vector<2xf32>
    %42 = vector.shape_cast %41 : vector<2xf32> to vector<2x1xf32>
    %cst_32 = arith.constant 3.200000e+01 : f32
    %43 = vector.broadcast %cst_32 : f32 to vector<2x1xf32>
    %44 = arith.divf %42, %43 : vector<2x1xf32>
    %45 = vector.broadcast %44 : vector<2x1xf32> to vector<2x32xf32>
    %46 = arith.subf %40, %45 : vector<2x32xf32>
    %47 = arith.mulf %46, %46 : vector<2x32xf32>
    %cst_33 = arith.constant dense<0.000000e+00> : vector<2xf32>
    %48 = vector.multi_reduction <add>, %47, %cst_33 [1] : vector<2x32xf32> to vector<2xf32>
    %49 = vector.shape_cast %48 : vector<2xf32> to vector<2x1xf32>
    %cst_34 = arith.constant 3.200000e+01 : f32
    %50 = vector.broadcast %cst_34 : f32 to vector<2x1xf32>
    %51 = arith.divf %49, %50 : vector<2x1xf32>
    %52 = vector.broadcast %44 : vector<2x1xf32> to vector<2x32xf32>
    %53 = arith.subf %40, %52 : vector<2x32xf32>
    %cst_35 = arith.constant 9.99999974E-6 : f32
    %54 = vector.broadcast %cst_35 : f32 to vector<2x1xf32>
    %55 = arith.addf %51, %54 : vector<2x1xf32>
    %56 = math.rsqrt %55 : vector<2x1xf32>
    %57 = vector.broadcast %56 : vector<2x1xf32> to vector<2x32xf32>
    %58 = arith.mulf %53, %57 : vector<2x32xf32>
    %c32 = arith.constant 32 : index
    %c0_36 = arith.constant 0 : index
    %59 = vector.load %arg13[%c32, %c0_36] : memref<104x64xf32, #tpu.memory_space<vmem>>, vector<1x32xf32>
    %60 = vector.broadcast %59 : vector<1x32xf32> to vector<2x32xf32>
    %61 = arith.mulf %58, %60 : vector<2x32xf32>
    %c40 = arith.constant 40 : index
    %c0_37 = arith.constant 0 : index
    %62 = vector.load %arg13[%c40, %c0_37] : memref<104x64xf32, #tpu.memory_space<vmem>>, vector<1x32xf32>
    %63 = vector.broadcast %62 : vector<1x32xf32> to vector<2x32xf32>
    %64 = arith.addf %61, %63 : vector<2x32xf32>
    %c0_38 = arith.constant 0 : index
    %c0_39 = arith.constant 0 : index
    %65 = vector.load %arg12[%c0_38, %c0_39] : memref<192x64xf32, #tpu.memory_space<vmem>>, vector<32x32xf32>
    %c32_40 = arith.constant 32 : index
    %c0_41 = arith.constant 0 : index
    %66 = vector.load %arg12[%c32_40, %c0_41] : memref<192x64xf32, #tpu.memory_space<vmem>>, vector<32x32xf32>
    %cst_42 = arith.constant dense<0.000000e+00> : vector<2x32xf32>
    %67 = tpu.matmul %32, %65, %cst_42 {dimension_numbers = #tpu.dot_dimension_numbers<[1], [0], [0], [1], [0, 0, 1, 1], [], []>} : vector<2x32xf32>, vector<32x32xf32>, vector<2x32xf32> -> vector<2x32xf32>
    %cst_43 = arith.constant dense<0.000000e+00> : vector<2x32xf32>
    %68 = tpu.matmul %64, %66, %cst_43 {dimension_numbers = #tpu.dot_dimension_numbers<[1], [0], [0], [1], [0, 0, 1, 1], [], []>} : vector<2x32xf32>, vector<32x32xf32>, vector<2x32xf32> -> vector<2x32xf32>
    %69 = arith.addf %67, %68 : vector<2x32xf32>
    %c48 = arith.constant 48 : index
    %c0_44 = arith.constant 0 : index
    %70 = vector.load %arg13[%c48, %c0_44] : memref<104x64xf32, #tpu.memory_space<vmem>>, vector<1x32xf32>
    %71 = vector.broadcast %70 : vector<1x32xf32> to vector<2x32xf32>
    %72 = arith.addf %69, %71 : vector<2x32xf32>
    %cst_45 = arith.constant 0.000000e+00 : f32
    %73 = vector.broadcast %cst_45 : f32 to vector<2x32xf32>
    %74 = arith.maximumf %72, %73 : vector<2x32xf32>
    %cst_46 = arith.constant dense<0.000000e+00> : vector<2xf32>
    %75 = vector.multi_reduction <add>, %74, %cst_46 [1] : vector<2x32xf32> to vector<2xf32>
    %76 = vector.shape_cast %75 : vector<2xf32> to vector<2x1xf32>
    %cst_47 = arith.constant 3.200000e+01 : f32
    %77 = vector.broadcast %cst_47 : f32 to vector<2x1xf32>
    %78 = arith.divf %76, %77 : vector<2x1xf32>
    %79 = vector.broadcast %78 : vector<2x1xf32> to vector<2x32xf32>
    %80 = arith.subf %74, %79 : vector<2x32xf32>
    %81 = arith.mulf %80, %80 : vector<2x32xf32>
    %cst_48 = arith.constant dense<0.000000e+00> : vector<2xf32>
    %82 = vector.multi_reduction <add>, %81, %cst_48 [1] : vector<2x32xf32> to vector<2xf32>
    %83 = vector.shape_cast %82 : vector<2xf32> to vector<2x1xf32>
    %cst_49 = arith.constant 3.200000e+01 : f32
    %84 = vector.broadcast %cst_49 : f32 to vector<2x1xf32>
    %85 = arith.divf %83, %84 : vector<2x1xf32>
    %86 = vector.broadcast %78 : vector<2x1xf32> to vector<2x32xf32>
    %87 = arith.subf %74, %86 : vector<2x32xf32>
    %cst_50 = arith.constant 9.99999974E-6 : f32
    %88 = vector.broadcast %cst_50 : f32 to vector<2x1xf32>
    %89 = arith.addf %85, %88 : vector<2x1xf32>
    %90 = math.rsqrt %89 : vector<2x1xf32>
    %91 = vector.broadcast %90 : vector<2x1xf32> to vector<2x32xf32>
    %92 = arith.mulf %87, %91 : vector<2x32xf32>
    %c56 = arith.constant 56 : index
    %c0_51 = arith.constant 0 : index
    %93 = vector.load %arg13[%c56, %c0_51] : memref<104x64xf32, #tpu.memory_space<vmem>>, vector<1x32xf32>
    %94 = vector.broadcast %93 : vector<1x32xf32> to vector<2x32xf32>
    %95 = arith.mulf %92, %94 : vector<2x32xf32>
    %c64 = arith.constant 64 : index
    %c0_52 = arith.constant 0 : index
    %96 = vector.load %arg13[%c64, %c0_52] : memref<104x64xf32, #tpu.memory_space<vmem>>, vector<1x32xf32>
    %97 = vector.broadcast %96 : vector<1x32xf32> to vector<2x32xf32>
    %98 = arith.addf %95, %97 : vector<2x32xf32>
    %c0_53 = arith.constant 0 : index
    %c0_54 = arith.constant 0 : index
    %99 = vector.load %arg16[%c0_53, %c0_54] : memref<2x32xf32, #tpu.memory_space<vmem>>, vector<2x32xf32>
    tpu.vector_store %arg16[%c0_53, %c0_54], %98 {strides = array<i32>} : memref<2x32xf32, #tpu.memory_space<vmem>>, vector<2x32xf32>,
    %c0_55 = arith.constant 0 : index
    %c0_56 = arith.constant 0 : index
    %100 = vector.load %arg5[%c0_55, %c0_56] : memref<14x1xf32, #tpu.memory_space<vmem>>, vector<14x1xf32>
    %c0_57 = arith.constant 0 : index
    %c0_58 = arith.constant 0 : index
    %101 = vector.load %arg4[%c0_57, %c0_58] : memref<14x12xf32, #tpu.memory_space<vmem>>, vector<14x12xf32>
    %cst_59 = arith.constant dense<0.000000e+00> : vector<14x32xf32>
    %102 = tpu.matmul %101, %25, %cst_59 {dimension_numbers = #tpu.dot_dimension_numbers<[1], [0], [0], [1], [0, 0, 1, 1], [], []>} : vector<14x12xf32>, vector<12x32xf32>, vector<14x32xf32> -> vector<14x32xf32>
    %cst_60 = arith.constant 1.000000e+00 : f32
    %103 = vector.broadcast %cst_60 : f32 to vector<14x1xf32>
    %104 = arith.subf %103, %100 : vector<14x1xf32>
    %cst_61 = arith.constant -9.990000e+02 : f32
    %105 = vector.broadcast %cst_61 : f32 to vector<14x1xf32>
    %106 = arith.mulf %104, %105 : vector<14x1xf32>
    %107 = vector.broadcast %106 : vector<14x1xf32> to vector<14x32xf32>
    %108 = arith.addf %102, %107 : vector<14x32xf32>
    %c96 = arith.constant 96 : index
    %c0_62 = arith.constant 0 : index
    %109 = vector.load %arg13[%c96, %c0_62] : memref<104x64xf32, #tpu.memory_space<vmem>>, vector<1x32xf32>
    %110 = vector.broadcast %109 : vector<1x32xf32> to vector<14x32xf32>
    %111 = arith.addf %108, %110 : vector<14x32xf32>
    %c0_63 = arith.constant 0 : index
    %c0_64 = arith.constant 0 : index
    %112 = vector.load %arg14[%c0_63, %c0_64] : memref<14x32xf32, #tpu.memory_space<vmem>>, vector<14x32xf32>
    tpu.vector_store %arg14[%c0_63, %c0_64], %111 {strides = array<i32>} : memref<14x32xf32, #tpu.memory_space<vmem>>, vector<14x32xf32>,
    %c96_65 = arith.constant 96 : index
    %c0_66 = arith.constant 0 : index
    %113 = vector.load %arg12[%c96_65, %c0_66] : memref<192x64xf32, #tpu.memory_space<vmem>>, vector<32x64xf32>
    %c128 = arith.constant 128 : index
    %c0_67 = arith.constant 0 : index
    %114 = vector.load %arg12[%c128, %c0_67] : memref<192x64xf32, #tpu.memory_space<vmem>>, vector<64x64xf32>
    %cst_68 = arith.constant dense<0.000000e+00> : vector<14x64xf32>
    %115 = tpu.matmul %111, %113, %cst_68 {dimension_numbers = #tpu.dot_dimension_numbers<[1], [0], [0], [1], [0, 0, 1, 1], [], []>} : vector<14x32xf32>, vector<32x64xf32>, vector<14x64xf32> -> vector<14x64xf32>
    %c72 = arith.constant 72 : index
    %c0_69 = arith.constant 0 : index
    %116 = vector.load %arg13[%c72, %c0_69] : memref<104x64xf32, #tpu.memory_space<vmem>>, vector<1x64xf32>
    %117 = vector.broadcast %116 : vector<1x64xf32> to vector<14x64xf32>
    %118 = arith.addf %115, %117 : vector<14x64xf32>
    %cst_70 = arith.constant 0.000000e+00 : f32
    %119 = vector.broadcast %cst_70 : f32 to vector<14x64xf32>
    %120 = arith.maximumf %118, %119 : vector<14x64xf32>
    %cst_71 = arith.constant dense<0.000000e+00> : vector<14x64xf32>
    %121 = tpu.matmul %120, %114, %cst_71 {dimension_numbers = #tpu.dot_dimension_numbers<[1], [0], [0], [1], [0, 0, 1, 1], [], []>} : vector<14x64xf32>, vector<64x64xf32>, vector<14x64xf32> -> vector<14x64xf32>
    %c80 = arith.constant 80 : index
    %c0_72 = arith.constant 0 : index
    %122 = vector.load %arg13[%c80, %c0_72] : memref<104x64xf32, #tpu.memory_space<vmem>>, vector<1x64xf32>
    %123 = vector.broadcast %122 : vector<1x64xf32> to vector<14x64xf32>
    %124 = arith.addf %121, %123 : vector<14x64xf32>
    %125 = vector.extract_strided_slice %124 {offsets = [0, 0], sizes = [14, 32], strides = [1, 1]} : vector<14x64xf32> to vector<14x32xf32>
    %126 = vector.extract_strided_slice %124 {offsets = [0, 32], sizes = [14, 32], strides = [1, 1]} : vector<14x64xf32> to vector<14x32xf32>
    %127 = math.absf %126 : vector<14x32xf32>
    %cst_73 = arith.constant 0.000000e+00 : f32
    %128 = vector.broadcast %cst_73 : f32 to vector<14x32xf32>
    %129 = arith.subf %128, %127 : vector<14x32xf32>
    %cst_74 = arith.constant 1.000000e+00 : f32
    %130 = vector.broadcast %cst_74 : f32 to vector<14x32xf32>
    %131 = arith.addf %130, %129 : vector<14x32xf32>
    %132 = arith.mulf %125, %125 : vector<14x32xf32>
    %133 = arith.subf %131, %132 : vector<14x32xf32>
    %134 = math.exp %129 : vector<14x32xf32>
    %135 = arith.subf %133, %134 : vector<14x32xf32>
    %136 = vector.shape_cast %135 : vector<14x32xf32> to vector<1x14x32xf32>
    %cst_75 = arith.constant dense<0.000000e+00> : vector<1xf32>
    %137 = vector.multi_reduction <add>, %136, %cst_75 [1, 2] : vector<1x14x32xf32> to vector<1xf32>
    %138 = vector.shape_cast %137 : vector<1xf32> to vector<1x1x1xf32>
    %139 = vector.extract %138[0, 0, 0] : f32 from vector<1x1x1xf32>
    %cst_76 = arith.constant -5.000000e-01 : f32
    %140 = arith.mulf %cst_76, %139 : f32
    %cst_77 = arith.constant 5.000000e-05 : f32
    %141 = arith.mulf %140, %cst_77 : f32
    %cst_78 = arith.constant 5.000000e-01 : f32
    %142 = vector.broadcast %cst_78 : f32 to vector<14x32xf32>
    %143 = arith.mulf %129, %142 : vector<14x32xf32>
    %144 = math.exp %143 : vector<14x32xf32>
    %c0_79 = arith.constant 0 : index
    %c0_80 = arith.constant 0 : index
    %145 = vector.load %arg9[%c0_79, %c0_80] : memref<14x32xf32, #tpu.memory_space<vmem>>, vector<14x32xf32>
    %146 = arith.mulf %144, %145 : vector<14x32xf32>
    %147 = arith.addf %125, %146 : vector<14x32xf32>
    %c64_81 = arith.constant 64 : index
    %c0_82 = arith.constant 0 : index
    %148 = vector.load %arg12[%c64_81, %c0_82] : memref<192x64xf32, #tpu.memory_space<vmem>>, vector<32x32xf32>
    %c0_83 = arith.constant 0 : index
    %c0_84 = arith.constant 0 : index
    %149 = vector.load %arg7[%c0_83, %c0_84] : memref<2x32xf32, #tpu.memory_space<vmem>>, vector<2x32xf32>
    %cst_85 = arith.constant dense<0.000000e+00> : vector<2x32xf32>
    %150 = tpu.matmul %149, %148, %cst_85 {dimension_numbers = #tpu.dot_dimension_numbers<[1], [0], [0], [1], [0, 0, 1, 1], [], []>} : vector<2x32xf32>, vector<32x32xf32>, vector<2x32xf32> -> vector<2x32xf32>
    %c88 = arith.constant 88 : index
    %c0_86 = arith.constant 0 : index
    %151 = vector.load %arg13[%c88, %c0_86] : memref<104x64xf32, #tpu.memory_space<vmem>>, vector<1x32xf32>
    %152 = vector.broadcast %151 : vector<1x32xf32> to vector<2x32xf32>
    %153 = arith.addf %150, %152 : vector<2x32xf32>
    %c0_87 = arith.constant 0 : index
    %c0_88 = arith.constant 0 : index
    %154 = vector.load %arg6[%c0_87, %c0_88] : memref<14x2xf32, #tpu.memory_space<vmem>>, vector<14x2xf32>
    %c0_89 = arith.constant 0 : index
    %c0_90 = arith.constant 0 : index
    %155 = vector.load %arg8[%c0_89, %c0_90] : memref<2x1xf32, #tpu.memory_space<vmem>>, vector<2x1xf32>
    %156 = vector.broadcast %155 : vector<2x1xf32> to vector<2x32xf32>
    %157 = arith.addf %153, %156 : vector<2x32xf32>
    %cst_91 = arith.constant dense<0.000000e+00> : vector<14x32xf32>
    %158 = tpu.matmul %154, %157, %cst_91 {dimension_numbers = #tpu.dot_dimension_numbers<[1], [0], [0], [1], [0, 0, 1, 1], [], []>} : vector<14x2xf32>, vector<2x32xf32>, vector<14x32xf32> -> vector<14x32xf32>
    %159 = arith.addf %147, %158 : vector<14x32xf32>
    %c0_92 = arith.constant 0 : index
    %c0_93 = arith.constant 0 : index
    %160 = vector.load %arg15[%c0_92, %c0_93] : memref<14x32xf32, #tpu.memory_space<vmem>>, vector<14x32xf32>
    tpu.vector_store %arg15[%c0_92, %c0_93], %159 {strides = array<i32>} : memref<14x32xf32, #tpu.memory_space<vmem>>, vector<14x32xf32>,
    %c0_94 = arith.constant 0 : index
    %c0_95 = arith.constant 0 : index
    %161 = memref.load %arg17[%c0_94, %c0_95] : memref<1x1xf32, #tpu.memory_space<smem>>
    memref.store %141, %arg17[%c0_94, %c0_95] : memref<1x1xf32, #tpu.memory_space<smem>>
    return
  }
}

</mosaic_0001>

<llo_original>
// kernel: encoder_forward.1
$region0: #{encoder_forward.1}
  #allocation0 [shape = 'u32[]', space=smem, size = 0x4, offset = 0x4, fixed_abs, tag = 'smem constant byte address 0x4 - core index']
  #allocation1 [shape = 'u32[72,128]{1,0:T(1,128)}', space=vmem, size = 0x9000, scoped, tag = 'internal scratch']
  %s0 = inlined_call_operand.vmem [shape: f32[12,12], index: 0, kind: input, shape index: {}]
  %s1 = inlined_call_operand.vmem [shape: f32[12,8], index: 1, kind: input, shape index: {}]
  %s2 = inlined_call_operand.vmem [shape: f32[2,12], index: 2, kind: input, shape index: {}]
  %s3 = inlined_call_operand.vmem [shape: f32[2,384], index: 3, kind: input, shape index: {}]
  %s4 = inlined_call_operand.vmem [shape: f32[14,12], index: 4, kind: input, shape index: {}]
  %s5 = inlined_call_operand.vmem [shape: f32[14,1], index: 5, kind: input, shape index: {}]
  %s6 = inlined_call_operand.vmem [shape: f32[14,2], index: 6, kind: input, shape index: {}]
  %s7 = inlined_call_operand.vmem [shape: f32[2,32], index: 7, kind: input, shape index: {}]
  %s8 = inlined_call_operand.vmem [shape: f32[2,1], index: 8, kind: input, shape index: {}]
  %s9 = inlined_call_operand.vmem [shape: f32[14,32], index: 9, kind: input, shape index: {}]
  %s10 = inlined_call_operand.vmem [shape: f32[48,32], index: 10, kind: input, shape index: {}]
  %s11 = inlined_call_operand.vmem [shape: f32[384,32], index: 11, kind: input, shape index: {}]
  %s12 = inlined_call_operand.vmem [shape: f32[192,64], index: 12, kind: input, shape index: {}]
  %s13 = inlined_call_operand.vmem [shape: f32[104,64], index: 13, kind: input, shape index: {}]
  %s14 = inlined_call_operand.vmem [shape: f32[14,32], index: 14, kind: output, shape index: {0}]
  %s15 = inlined_call_operand.vmem [shape: f32[14,32], index: 15, kind: output, shape index: {1}]
  %s16 = inlined_call_operand.hbm [shape: f32[2,32], index: 16, kind: output, shape index: {2}]
  %s17 = inlined_call_operand.hbm [shape: f32[1,1], index: 17, kind: output, shape index: {3}]
  %18 = xla_tuple %s14, %s15, %s16, %s17
  %s19 = sld [smem:[#allocation0]]
  $region90: #{encoder_forward.1} parent=0
    _
  %s21 = ssub.s32 1, %s19
  %s22 = scalar_select 0, %s21, %s19
  $region1: #{encoder_forward.1} parent=0
    #allocation2 [shape = 'u8[1024]{0}', space=vmem, size = 0x400, scoped, tag = 'output window, operand 2, single buffered']
    #allocation3 [shape = 's32[1]{0}', space=sflag, size = 0x4, scoped, tag = 'scoped memory for encoder_forward.1']
    #allocation4 [shape = 's32[1]{0}', space=sflag, size = 0x4, scoped, tag = 'scoped memory for encoder_forward.1']
    #allocation5 [shape = 'u8[512]{0}', space=smem, size = 0x200, scoped, tag = 'output window, operand 3, single buffered']
    %23 = vsyncpa [#allocation3], 0
    %24 = vsyncpa [#allocation4], 0
    // Predicated region
    $region2: #{encoder_forward.1} parent=1 // pred_check
      _
    $region3: #{encoder_forward.1} parent=1 // pred_check_branch
      %26 = sbr.rel (0) target = $region5
    $region4: #{encoder_forward.1} parent=1 // pred_region
      _
    $region5: #{encoder_forward.1} parent=1 // pred_fallthru
      _
    // Predicated region
    $region6: #{encoder_forward.1} parent=1 // pred_check
      _
    $region7: #{encoder_forward.1} parent=1 // pred_check_branch
      %28 = sbr.rel (0) target = $region9
    $region8: #{encoder_forward.1} parent=1 // pred_region
      _
    $region9: #{encoder_forward.1} parent=1 // pred_fallthru
      _
    // Predicated region
    $region10: #{encoder_forward.1} parent=1 // pred_check
      _
    $region11: #{encoder_forward.1} parent=1 // pred_check_branch
      %30 = sbr.rel (0) target = $region13
    $region12: #{encoder_forward.1} parent=1 // pred_region
      _
    $region13: #{encoder_forward.1} parent=1 // pred_fallthru
      _
    // Predicated region
    $region14: #{encoder_forward.1} parent=1 // pred_check
      _
    $region15: #{encoder_forward.1} parent=1 // pred_check_branch
      %32 = sbr.rel (0) target = $region17
    $region16: #{encoder_forward.1} parent=1 // pred_region
      _
    $region17: #{encoder_forward.1} parent=1 // pred_fallthru
      _
    // Predicated region
    $region18: #{encoder_forward.1} parent=1 // pred_check
      _
    $region19: #{encoder_forward.1} parent=1 // pred_check_branch
      %34 = sbr.rel (0) target = $region21
    $region20: #{encoder_forward.1} parent=1 // pred_region
      _
    $region21: #{encoder_forward.1} parent=1 // pred_fallthru
      _
    // Predicated region
    $region22: #{encoder_forward.1} parent=1 // pred_check
      _
    $region23: #{encoder_forward.1} parent=1 // pred_check_branch
      %36 = sbr.rel (0) target = $region25
    $region24: #{encoder_forward.1} parent=1 // pred_region
      _
    $region25: #{encoder_forward.1} parent=1 // pred_fallthru
      _
    // Predicated region
    $region26: #{encoder_forward.1} parent=1 // pred_check
      _
    $region27: #{encoder_forward.1} parent=1 // pred_check_branch
      %38 = sbr.rel (0) target = $region29
    $region28: #{encoder_forward.1} parent=1 // pred_region
      _
    $region29: #{encoder_forward.1} parent=1 // pred_fallthru
      _
    // Predicated region
    $region30: #{encoder_forward.1} parent=1 // pred_check
      _
    $region31: #{encoder_forward.1} parent=1 // pred_check_branch
      %40 = sbr.rel (0) target = $region33
    $region32: #{encoder_forward.1} parent=1 // pred_region
      _
    $region33: #{encoder_forward.1} parent=1 // pred_fallthru
      _
    // Predicated region
    $region34: #{encoder_forward.1} parent=1 // pred_check
      _
    $region35: #{encoder_forward.1} parent=1 // pred_check_branch
      %42 = sbr.rel (0) target = $region37
    $region36: #{encoder_forward.1} parent=1 // pred_region
      _
    $region37: #{encoder_forward.1} parent=1 // pred_fallthru
      _
    // Predicated region
    $region38: #{encoder_forward.1} parent=1 // pred_check
      _
    $region39: #{encoder_forward.1} parent=1 // pred_check_branch
      %44 = sbr.rel (0) target = $region41
    $region40: #{encoder_forward.1} parent=1 // pred_region
      _
    $region41: #{encoder_forward.1} parent=1 // pred_fallthru
      _
    // Predicated region
    $region42: #{encoder_forward.1} parent=1 // pred_check
      _
    $region43: #{encoder_forward.1} parent=1 // pred_check_branch
      %46 = sbr.rel (0) target = $region45
    $region44: #{encoder_forward.1} parent=1 // pred_region
      _
    $region45: #{encoder_forward.1} parent=1 // pred_fallthru
      _
    // Predicated region
    $region46: #{encoder_forward.1} parent=1 // pred_check
      _
    $region47: #{encoder_forward.1} parent=1 // pred_check_branch
      %48 = sbr.rel (0) target = $region49
    $region48: #{encoder_forward.1} parent=1 // pred_region
      _
    $region49: #{encoder_forward.1} parent=1 // pred_fallthru
      _
    // Predicated region
    $region50: #{encoder_forward.1} parent=1 // pred_check
      _
    $region51: #{encoder_forward.1} parent=1 // pred_check_branch
      %50 = sbr.rel (0) target = $region53
    $region52: #{encoder_forward.1} parent=1 // pred_region
      _
    $region53: #{encoder_forward.1} parent=1 // pred_fallthru
      _
    // Predicated region
    $region54: #{encoder_forward.1} parent=1 // pred_check
      _
    $region55: #{encoder_forward.1} parent=1 // pred_check_branch
      %52 = sbr.rel (0) target = $region57
    $region56: #{encoder_forward.1} parent=1 // pred_region
      _
    $region57: #{encoder_forward.1} parent=1 // pred_fallthru
      _
    %v53 = vld [vmem:[%s0] sm:$0xff]
    %v54 = vld [vmem:[%s0 + $0x8] sm:$0xf]
    %v55 = vld [vmem:[%s10] sm:$0xff]
    %v56 = vld [vmem:[%s10 + $0x8] sm:$0xff]
    %v57 = vld [vmem:[%s10 + $0x10] sm:$0xff]
    %v58 = vld [vmem:[%s10 + $0x18] sm:$0xff]
    %v59 = vld [vmem:[%s10 + $0x20] sm:$0xff]
    %v60 = vld [vmem:[%s10 + $0x28] sm:$0xff]
    %v61 = vld [vmem:[%s1] sm:$0xff]
    %v62 = vld [vmem:[%s1 + $0x8] sm:$0xf]
    %vm63 = vcmask 64512
    %v65 = vsel %vm63, %v61, 0
    %v68 = vsel %vm63, %v62, 0
    %70 = vmatpush.msra.mxu0 0.0
    %71 = vmatpush.msra.mxu0 0.0
    %72 = vmatpush.msra.mxu0 0.0
    %73 = vmatpush.msra.mxu0 0.0
    %74 = vmatpush.msra.mxu0 0.0
    %75 = vmatpush.msra.mxu0 0.0
    %76 = vmatpush.msra.mxu0 0.0
    %77 = vmatpush.msra.mxu0 0.0
    %78 = vmatpush.msra.mxu0 0.0
    %79 = vmatpush.msra.mxu0 0.0
    %80 = vmatpush.msra.mxu0 0.0
    %81 = vmatpush.msra.mxu0 0.0
    %82 = vmatpush.msra.mxu0 0.0
    %83 = vmatpush.msra.mxu0 0.0
    %84 = vmatpush.msra.mxu0 0.0
    %85 = vmatpush.msra.mxu0 %v55
    %86 = vmatmul.f32.gmra.mxu0 %v65
    %v87 = vpop.f32.mrf.mxu0
    %v88 = vadd.f32 0.0, %v87
    %89 = vmatmul.f32.gmra.mxu0 %v68
    %v90 = vpop.f32.mrf.mxu0
    %v91 = vadd.f32 0.0, %v90
    %92 = vdwg.mxu0
    %v93 = vld [vmem:[%s13] sm:$0x1]
    %v94 = vperm.slane %v93, 0
    %vm95 = vcmask 97280
    %v97 = vsel %vm95, %v53, 0
    %v100 = vsel %vm95, %v54, 0
    %vm102 = vcmask 1043456
    %v104 = vsel %vm102, %v91, 0
    %106 = vmatpush.msra.mxu0 0.0
    %107 = vmatpush.msra.mxu0 0.0
    %108 = vmatpush.msra.mxu0 0.0
    %109 = vmatpush.msra.mxu0 0.0
    %110 = vmatpush.msra.mxu0 0.0
    %111 = vmatpush.msra.mxu0 0.0
    %112 = vmatpush.msra.mxu0 0.0
    %113 = vmatpush.msra.mxu0 0.0
    %114 = vmatpush.msra.mxu0 0.0
    %115 = vmatpush.msra.mxu0 0.0
    %116 = vmatpush.msra.mxu0 0.0
    %117 = vmatpush.msra.mxu0 0.0
    %118 = vmatpush.msra.mxu0 0.0
    %119 = vmatpush.msra.mxu0 0.0
    %120 = vmatpush.msra.mxu0 %v104
    %121 = vmatpush.msra.mxu0 %v88
    %122 = vmatmul.f32.gmra.mxu0 %v97
    %v123 = vpop.f32.mrf.mxu0
    %v124 = vadd.f32 %v94, %v123
    %125 = vmatmul.f32.gmra.mxu0 %v100
    %v126 = vpop.f32.mrf.mxu0
    %v127 = vadd.f32 %v94, %v126
    %128 = vdwg.mxu0
    %v129 = vmax.f32 %v124, 0.0
    %v130 = vmax.f32 %v127, 0.0
    %vm131 = vcmask 130048
    %v133 = vsel %vm131, %v129, 0
    %v136 = vsel %vm131, %v130, 0
    %138 = vmatpush.msra.mxu0 0.0
    %139 = vmatpush.msra.mxu0 0.0
    %140 = vmatpush.msra.mxu0 0.0
    %141 = vmatpush.msra.mxu0 0.0
    %142 = vmatpush.msra.mxu0 0.0
    %143 = vmatpush.msra.mxu0 0.0
    %144 = vmatpush.msra.mxu0 0.0
    %145 = vmatpush.msra.mxu0 0.0
    %146 = vmatpush.msra.mxu0 0.0
    %147 = vmatpush.msra.mxu0 0.0
    %148 = vmatpush.msra.mxu0 0.0
    %149 = vmatpush.msra.mxu0 0.0
    %150 = vmatpush.msra.mxu0 0.0
    %151 = vmatpush.msra.mxu0 0.0
    %152 = vmatpush.msra.mxu0 %v57
    %153 = vmatpush.msra.mxu0 %v56
    %154 = vmatmul.f32.gmra.mxu0 %v133
    %v155 = vpop.f32.mrf.mxu0
    %v156 = vadd.f32 0.0, %v155
    %157 = vmatmul.f32.gmra.mxu0 %v136
    %v158 = vpop.f32.mrf.mxu0
    %v159 = vadd.f32 0.0, %v158
    %160 = vdwg.mxu0
    %v161 = vld [vmem:[%s13 + $0x8] sm:$0x1]
    %v162 = vperm.slane %v161, 0
    %v164 = vsel %vm102, %v159, 0
    %166 = vmatpush.msra.mxu0 0.0
    %167 = vmatpush.msra.mxu0 0.0
    %168 = vmatpush.msra.mxu0 0.0
    %169 = vmatpush.msra.mxu0 0.0
    %170 = vmatpush.msra.mxu0 0.0
    %171 = vmatpush.msra.mxu0 0.0
    %172 = vmatpush.msra.mxu0 0.0
    %173 = vmatpush.msra.mxu0 0.0
    %174 = vmatpush.msra.mxu0 0.0
    %175 = vmatpush.msra.mxu0 0.0
    %176 = vmatpush.msra.mxu0 0.0
    %177 = vmatpush.msra.mxu0 0.0
    %178 = vmatpush.msra.mxu0 0.0
    %179 = vmatpush.msra.mxu0 0.0
    %180 = vmatpush.msra.mxu0 %v164
    %181 = vmatpush.msra.mxu0 %v156
    %182 = vmatmul.f32.gmra.mxu0 %v97
    %v183 = vpop.f32.mrf.mxu0
    %v184 = vadd.f32 %v162, %v183
    %185 = vmatmul.f32.gmra.mxu0 %v100
    %v186 = vpop.f32.mrf.mxu0
    %v187 = vadd.f32 %v162, %v186
    %188 = vdwg.mxu0
    %v189 = vmax.f32 %v184, 0.0
    %v190 = vmax.f32 %v187, 0.0
    %vm191 = vcmask 195584
    %v193 = vsel %vm191, %v189, 0
    %v196 = vsel %vm191, %v190, 0
    %198 = vmatpush.msra.mxu0 0.0
    %199 = vmatpush.msra.mxu0 0.0
    %200 = vmatpush.msra.mxu0 0.0
    %201 = vmatpush.msra.mxu0 0.0
    %202 = vmatpush.msra.mxu0 0.0
    %203 = vmatpush.msra.mxu0 0.0
    %204 = vmatpush.msra.mxu0 0.0
    %205 = vmatpush.msra.mxu0 0.0
    %206 = vmatpush.msra.mxu0 0.0
    %207 = vmatpush.msra.mxu0 0.0
    %208 = vmatpush.msra.mxu0 0.0
    %209 = vmatpush.msra.mxu0 0.0
    %210 = vmatpush.msra.mxu0 0.0
    %211 = vmatpush.msra.mxu0 %v60
    %212 = vmatpush.msra.mxu0 %v59
    %213 = vmatpush.msra.mxu0 %v58
    %214 = vmatmul.f32.gmra.mxu0 %v193
    %v215 = vpop.f32.mrf.mxu0
    %v216 = vadd.f32 0.0, %v215
    %217 = vmatmul.f32.gmra.mxu0 %v196
    %v218 = vpop.f32.mrf.mxu0
    %v219 = vadd.f32 0.0, %v218
    %220 = vdwg.mxu0
    %v221 = vld [vmem:[%s13 + $0x10] sm:$0x1]
    %v222 = vperm.slane %v221, 0
    %v224 = vsel %vm102, %v219, 0
    %226 = vmatpush.msra.mxu0 0.0
    %227 = vmatpush.msra.mxu0 0.0
    %228 = vmatpush.msra.mxu0 0.0
    %229 = vmatpush.msra.mxu0 0.0
    %230 = vmatpush.msra.mxu0 0.0
    %231 = vmatpush.msra.mxu0 0.0
    %232 = vmatpush.msra.mxu0 0.0
    %233 = vmatpush.msra.mxu0 0.0
    %234 = vmatpush.msra.mxu0 0.0
    %235 = vmatpush.msra.mxu0 0.0
    %236 = vmatpush.msra.mxu0 0.0
    %237 = vmatpush.msra.mxu0 0.0
    %238 = vmatpush.msra.mxu0 0.0
    %239 = vmatpush.msra.mxu0 0.0
    %240 = vmatpush.msra.mxu0 %v224
    %241 = vmatpush.msra.mxu0 %v216
    %242 = vmatmul.f32.gmra.mxu0 %v97
    %v243 = vpop.f32.mrf.mxu0
    %v244 = vadd.f32 %v222, %v243
    %245 = vmatmul.f32.gmra.mxu0 %v100
    %v246 = vpop.f32.mrf.mxu0
    %v247 = vadd.f32 %v222, %v246
    %248 = vdwg.mxu0
    %v249 = vmax.f32 %v244, 0.0
    %v250 = vmax.f32 %v247, 0.0
    %v251 = vld [vmem:[%s2] sm:$0x3]
    %v252 = vperm.slane %v251, 0
    %v253 = vlaneseq
    %v254 = vshrl.u32 %v253, 7
    %256 = vset.pattern.permute.xlu0 %v254
    %257 = vperm.xlu0 %256, %v252
    %v258 = vpop.permute.xlu0 %257
    %v259 = vlaneseq
    %v260 = vshrl.u32 %v259, 7
    %v261 = vadd.s32 %v260, 8
    %262 = vset.pattern.permute.xlu0 %v261
    %263 = vperm.xlu0 %262, %v252
    %v264 = vpop.permute.xlu0 %263
    %v265 = vperm.slane %v251, 1
    %v266 = vlaneseq
    %v267 = vshrl.u32 %v266, 7
    %269 = vset.pattern.permute.xlu0 %v267
    %270 = vperm.xlu0 %269, %v265
    %v271 = vpop.permute.xlu0 %270
    %v272 = vlaneseq
    %v273 = vshrl.u32 %v272, 7
    %v274 = vadd.s32 %v273, 8
    %275 = vset.pattern.permute.xlu0 %v274
    %276 = vperm.xlu0 %275, %v265
    %v277 = vpop.permute.xlu0 %276
    %v278 = vmul.f32 %v258, %v249
    %v279 = vmul.f32 %v264, %v250
    %v280 = vmul.f32 %v271, %v249
    %v281 = vmul.f32 %v277, %v250
    %vm282 = vcmask 261120
    %v283 = vsel %vm282, %v278, -inf
    %vm284 = vcmask 257024
    %v285 = vsel %vm284, %v279, -inf
    %v286 = vmax.f32 %v283, %v285
    %v287 = vrot.slane %v286, 4
    %v288 = vmax.f32 %v286, %v287
    %v289 = vrot.slane %v288, 2
    %v290 = vmax.f32 %v288, %v289
    %v291 = vrot.slane %v290, 1
    %v292 = vmax.f32 %v290, %v291
    %v293 = vsel %vm282, %v280, -inf
    %v294 = vsel %vm284, %v281, -inf
    %v295 = vmax.f32 %v293, %v294
    %v296 = vrot.slane %v295, 4
    %v297 = vmax.f32 %v295, %v296
    %v298 = vrot.slane %v297, 2
    %v299 = vmax.f32 %v297, %v298
    %v300 = vrot.slane %v299, 1
    %v301 = vmax.f32 %v299, %v300
    %v302 = vld [vmem:[%s3] sm:$0x3f]
    %v303 = vld [vmem:[%s11] sm:$0xff]
    %v304 = vld [vmem:[%s11 + $0x8] sm:$0xff]
    %v305 = vld [vmem:[%s11 + $0x10] sm:$0xff]
    %v306 = vld [vmem:[%s11 + $0x18] sm:$0xff]
    %v307 = vld [vmem:[%s11 + $0x20] sm:$0xff]
    %v308 = vld [vmem:[%s11 + $0x28] sm:$0xff]
    %v309 = vld [vmem:[%s11 + $0x30] sm:$0xff]
    %v310 = vld [vmem:[%s11 + $0x38] sm:$0xff]
    %v311 = vld [vmem:[%s11 + $0x40] sm:$0xff]
    %v312 = vld [vmem:[%s11 + $0x48] sm:$0xff]
    %v313 = vld [vmem:[%s11 + $0x50] sm:$0xff]
    %v314 = vld [vmem:[%s11 + $0x58] sm:$0xff]
    %v315 = vld [vmem:[%s11 + $0x60] sm:$0xff]
    %v316 = vld [vmem:[%s11 + $0x68] sm:$0xff]
    %v317 = vld [vmem:[%s11 + $0x70] sm:$0xff]
    %v318 = vld [vmem:[%s11 + $0x78] sm:$0xff]
    %v319 = vld [vmem:[%s11 + $0x80] sm:$0xff]
    %v320 = vld [vmem:[%s11 + $0x88] sm:$0xff]
    %v321 = vld [vmem:[%s11 + $0x90] sm:$0xff]
    %v322 = vld [vmem:[%s11 + $0x98] sm:$0xff]
    %v323 = vld [vmem:[%s11 + $0xa0] sm:$0xff]
    %v324 = vld [vmem:[%s11 + $0xa8] sm:$0xff]
    %v325 = vld [vmem:[%s11 + $0xb0] sm:$0xff]
    %v326 = vld [vmem:[%s11 + $0xb8] sm:$0xff]
    %v327 = vld [vmem:[%s11 + $0xc0] sm:$0xff]
    %v328 = vld [vmem:[%s11 + $0xc8] sm:$0xff]
    %v329 = vld [vmem:[%s11 + $0xd0] sm:$0xff]
    %v330 = vld [vmem:[%s11 + $0xd8] sm:$0xff]
    %v331 = vld [vmem:[%s11 + $0xe0] sm:$0xff]
    %v332 = vld [vmem:[%s11 + $0xe8] sm:$0xff]
    %v333 = vld [vmem:[%s11 + $0xf0] sm:$0xff]
    %v334 = vld [vmem:[%s11 + $0xf8] sm:$0xff]
    %v335 = vld [vmem:[%s11 + $0x100] sm:$0xff]
    %v336 = vld [vmem:[%s11 + $0x108] sm:$0xff]
    %v337 = vld [vmem:[%s11 + $0x110] sm:$0xff]
    %v338 = vld [vmem:[%s11 + $0x118] sm:$0xff]
    %v339 = vld [vmem:[%s11 + $0x120] sm:$0xff]
    %v340 = vld [vmem:[%s11 + $0x128] sm:$0xff]
    %v341 = vld [vmem:[%s11 + $0x130] sm:$0xff]
    %v342 = vld [vmem:[%s11 + $0x138] sm:$0xff]
    %v343 = vld [vmem:[%s11 + $0x140] sm:$0xff]
    %v344 = vld [vmem:[%s11 + $0x148] sm:$0xff]
    %v345 = vld [vmem:[%s11 + $0x150] sm:$0xff]
    %v346 = vld [vmem:[%s11 + $0x158] sm:$0xff]
    %v347 = vld [vmem:[%s11 + $0x160] sm:$0xff]
    %v348 = vld [vmem:[%s11 + $0x168] sm:$0xff]
    %v349 = vld [vmem:[%s11 + $0x170] sm:$0xff]
    %v350 = vld [vmem:[%s11 + $0x178] sm:$0xff]
    %v351 = vld [vmem:[%s13 + $0x18] sm:$0x1]
    %v352 = vperm.slane %v351, 0
    %354 = vst [vmem:[#allocation1] ss:$4 sm:$0xff] %v302
    %v355 = vld.sshfl [vmem:[#allocation1] sm:$0xff pattern:$0x73625140]
    %v356 = vld.sshfl [vmem:[#allocation1 + $0x8] sm:$0xff pattern:$0x73625140]
    %v357 = vld.sshfl [vmem:[#allocation1 + $0x10] sm:$0xff pattern:$0x73625140]
    %361 = vmatpush.msra.mxu0 %v318
    %362 = vmatpush.msra.mxu0 %v317
    %363 = vmatpush.msra.mxu0 %v316
    %364 = vmatpush.msra.mxu0 %v315
    %365 = vmatpush.msra.mxu0 %v314
    %366 = vmatpush.msra.mxu0 %v313
    %367 = vmatpush.msra.mxu0 %v312
    %368 = vmatpush.msra.mxu0 %v311
    %369 = vmatpush.msra.mxu0 %v310
    %370 = vmatpush.msra.mxu0 %v309
    %371 = vmatpush.msra.mxu0 %v308
    %372 = vmatpush.msra.mxu0 %v307
    %373 = vmatpush.msra.mxu0 %v306
    %374 = vmatpush.msra.mxu0 %v305
    %375 = vmatpush.msra.mxu0 %v304
    %376 = vmatpush.msra.mxu0 %v303
    %377 = vmatmul.f32.gmra.mxu0 %v355
    %v378 = vpop.f32.mrf.mxu0
    %v379 = vadd.f32 %v352, %v378
    %380 = vdwg.mxu0
    %381 = vmatpush.msra.mxu0 %v334
    %382 = vmatpush.msra.mxu0 %v333
    %383 = vmatpush.msra.mxu0 %v332
    %384 = vmatpush.msra.mxu0 %v331
    %385 = vmatpush.msra.mxu0 %v330
    %386 = vmatpush.msra.mxu0 %v329
    %387 = vmatpush.msra.mxu0 %v328
    %388 = vmatpush.msra.mxu0 %v327
    %389 = vmatpush.msra.mxu0 %v326
    %390 = vmatpush.msra.mxu0 %v325
    %391 = vmatpush.msra.mxu0 %v324
    %392 = vmatpush.msra.mxu0 %v323
    %393 = vmatpush.msra.mxu0 %v322
    %394 = vmatpush.msra.mxu0 %v321
    %395 = vmatpush.msra.mxu0 %v320
    %396 = vmatpush.msra.mxu0 %v319
    %397 = vmatmul.f32.gmra.mxu0 %v356
    %v398 = vpop.f32.mrf.mxu0
    %v399 = vadd.f32 %v379, %v398
    %400 = vdwg.mxu0
    %401 = vmatpush.msra.mxu0 %v350
    %402 = vmatpush.msra.mxu0 %v349
    %403 = vmatpush.msra.mxu0 %v348
    %404 = vmatpush.msra.mxu0 %v347
    %405 = vmatpush.msra.mxu0 %v346
    %406 = vmatpush.msra.mxu0 %v345
    %407 = vmatpush.msra.mxu0 %v344
    %408 = vmatpush.msra.mxu0 %v343
    %409 = vmatpush.msra.mxu0 %v342
    %410 = vmatpush.msra.mxu0 %v341
    %411 = vmatpush.msra.mxu0 %v340
    %412 = vmatpush.msra.mxu0 %v339
    %413 = vmatpush.msra.mxu0 %v338
    %414 = vmatpush.msra.mxu0 %v337
    %415 = vmatpush.msra.mxu0 %v336
    %416 = vmatpush.msra.mxu0 %v335
    %417 = vmatmul.f32.gmra.mxu0 %v357
    %v418 = vpop.f32.mrf.mxu0
    %v419 = vadd.f32 %v399, %v418
    %420 = vdwg.mxu0
    %v421 = vmax.f32 %v419, 0.0
    %vm422 = vcmask 254976
    %v423 = vsel %vm422, %v421, 0.0
    %424 = vadd.xlane.f32.xlu0 %v423
    %v425 = vpop.xlane.xlu0 %424
    %v426 = vrcp.pop 32.0
    %v427 = vmul.f32 32.0, %v426
    %v428 = vsub.f32 1.0, %v427
    %v429 = vmul.f32 %v426, %v428
    %v430 = vadd.f32 %v426, %v429
    %vm431 = vweird.f32 %v426
    %v432 = vsel %vm431, %v426, %v430
    %v433 = vmul.f32 %v425, %v432
    %v434 = vsub.f32 %v421, %v433
    %v435 = vmul.f32 %v434, %v434
    %v436 = vsel %vm422, %v435, 0.0
    %437 = vadd.xlane.f32.xlu0 %v436
    %v438 = vpop.xlane.xlu0 %437
    %v439 = vmul.f32 %v438, %v432
    %v440 = vadd.f32 %v439, 1e-05
    %v441 = vrsqrt.pop %v440
    %v442 = vmul.f32 %v441, %v440
    %v443 = vmul.f32 %v442, %v441
    %v444 = vmul.f32 0.5, %v443
    %v445 = vsub.f32 1.5, %v444
    %v446 = vmul.f32 %v441, %v445
    %vm447 = vweird.f32 %v440
    %vm448 = vweird.f32 %v441
    %vm449 = vmor %vm447, %vm448
    %v450 = vsel %vm449, %v441, %v446
    %v451 = vmul.f32 %v434, %v450
    %v452 = vld [vmem:[%s13 + $0x20] sm:$0x1]
    %v453 = vperm.slane %v452, 0
    %v454 = vmul.f32 %v451, %v453
    %v455 = vld [vmem:[%s13 + $0x28] sm:$0x1]
    %v456 = vperm.slane %v455, 0
    %v457 = vadd.f32 %v454, %v456
    %v458 = vld [vmem:[%s12] sm:$0xff]
    %v459 = vld [vmem:[%s12 + $0x8] sm:$0xff]
    %v460 = vld [vmem:[%s12 + $0x10] sm:$0xff]
    %v461 = vld [vmem:[%s12 + $0x18] sm:$0xff]
    %v462 = vld [vmem:[%s12 + $0x20] sm:$0xff]
    %v463 = vld [vmem:[%s12 + $0x28] sm:$0xff]
    %v464 = vld [vmem:[%s12 + $0x30] sm:$0xff]
    %v465 = vld [vmem:[%s12 + $0x38] sm:$0xff]
    %v467 = vsel %vm282, %v457, 0
    %469 = vmatpush.msra.mxu0 0.0
    %470 = vmatpush.msra.mxu0 0.0
    %471 = vmatpush.msra.mxu0 0.0
    %472 = vmatpush.msra.mxu0 0.0
    %473 = vmatpush.msra.mxu0 0.0
    %474 = vmatpush.msra.mxu0 0.0
    %475 = vmatpush.msra.mxu0 0.0
    %476 = vmatpush.msra.mxu0 0.0
    %477 = vmatpush.msra.mxu0 0.0
    %478 = vmatpush.msra.mxu0 0.0
    %479 = vmatpush.msra.mxu0 0.0
    %480 = vmatpush.msra.mxu0 0.0
    %481 = vmatpush.msra.mxu0 %v465
    %482 = vmatpush.msra.mxu0 %v464
    %483 = vmatpush.msra.mxu0 %v463
    %484 = vmatpush.msra.mxu0 %v462
    %485 = vmatmul.f32.gmra.mxu0 %v467
    %v486 = vpop.f32.mrf.mxu0
    %v487 = vadd.f32 0.0, %v486
    %488 = vdwg.mxu0
    %vm491 = vcmask 1041409
    %v492 = vsel %vm491, %v301, %v292
    %v493 = vsel %vm282, %v492, 0
    %495 = vmatpush.msra.mxu0 0.0
    %496 = vmatpush.msra.mxu0 0.0
    %497 = vmatpush.msra.mxu0 0.0
    %498 = vmatpush.msra.mxu0 0.0
    %499 = vmatpush.msra.mxu0 0.0
    %500 = vmatpush.msra.mxu0 0.0
    %501 = vmatpush.msra.mxu0 0.0
    %502 = vmatpush.msra.mxu0 0.0
    %503 = vmatpush.msra.mxu0 0.0
    %504 = vmatpush.msra.mxu0 0.0
    %505 = vmatpush.msra.mxu0 0.0
    %506 = vmatpush.msra.mxu0 0.0
    %507 = vmatpush.msra.mxu0 %v461
    %508 = vmatpush.msra.mxu0 %v460
    %509 = vmatpush.msra.mxu0 %v459
    %510 = vmatpush.msra.mxu0 %v458
    %511 = vmatmul.f32.gmra.mxu0 %v493
    %v512 = vpop.f32.mrf.mxu0
    %v513 = vadd.f32 %v487, %v512
    %514 = vdwg.mxu0
    %v515 = vld [vmem:[%s13 + $0x30] sm:$0x1]
    %v516 = vperm.slane %v515, 0
    %v517 = vadd.f32 %v513, %v516
    %v518 = vmax.f32 %v517, 0.0
    %v519 = vsel %vm422, %v518, 0.0
    %520 = vadd.xlane.f32.xlu0 %v519
    %v521 = vpop.xlane.xlu0 %520
    %v522 = vmul.f32 %v521, %v432
    %v523 = vsub.f32 %v518, %v522
    %v524 = vmul.f32 %v523, %v523
    %v525 = vsel %vm422, %v524, 0.0
    %526 = vadd.xlane.f32.xlu0 %v525
    %v527 = vpop.xlane.xlu0 %526
    %v528 = vmul.f32 %v527, %v432
    %v529 = vadd.f32 %v528, 1e-05
    %v530 = vrsqrt.pop %v529
    %v531 = vmul.f32 %v530, %v529
    %v532 = vmul.f32 %v531, %v530
    %v533 = vmul.f32 0.5, %v532
    %v534 = vsub.f32 1.5, %v533
    %v535 = vmul.f32 %v530, %v534
    %vm536 = vweird.f32 %v529
    %vm537 = vweird.f32 %v530
    %vm538 = vmor %vm536, %vm537
    %v539 = vsel %vm538, %v530, %v535
    %v540 = vmul.f32 %v523, %v539
    %v541 = vld [vmem:[%s13 + $0x38] sm:$0x1]
    %v542 = vperm.slane %v541, 0
    %v543 = vmul.f32 %v540, %v542
    %v544 = vld [vmem:[%s13 + $0x40] sm:$0x1]
    %v545 = vperm.slane %v544, 0
    %v546 = vadd.f32 %v543, %v545
    %547 = vst.msk [vmem:[#allocation2] sm:$0x3] %vm422, %v546
    %v548 = vld [vmem:[%s5] sm:$0xff]
    %v549 = vld [vmem:[%s5 + $0x8] sm:$0x3f]
    %v550 = vld [vmem:[%s4] sm:$0xff]
    %v551 = vld [vmem:[%s4 + $0x8] sm:$0x3f]
    %v552 = vsub.f32 1.0, %v548
    %v553 = vsub.f32 1.0, %v549
    %v554 = vmul.f32 %v552, -999.0
    %v555 = vmul.f32 %v553, -999.0
    %557 = vset.pattern.permute.xlu0 0
    %558 = vperm.xlu0 %557, %v554
    %v559 = vpop.permute.xlu0 %558
    %562 = vset.pattern.permute.xlu0 0
    %563 = vperm.xlu0 %562, %v555
    %v564 = vpop.permute.xlu0 %563
    %v567 = vsel %vm95, %v550, 0
    %v570 = vsel %vm95, %v551, 0
    %v573 = vsel %vm102, %v250, 0
    %575 = vmatpush.msra.mxu0 0.0
    %576 = vmatpush.msra.mxu0 0.0
    %577 = vmatpush.msra.mxu0 0.0
    %578 = vmatpush.msra.mxu0 0.0
    %579 = vmatpush.msra.mxu0 0.0
    %580 = vmatpush.msra.mxu0 0.0
    %581 = vmatpush.msra.mxu0 0.0
    %582 = vmatpush.msra.mxu0 0.0
    %583 = vmatpush.msra.mxu0 0.0
    %584 = vmatpush.msra.mxu0 0.0
    %585 = vmatpush.msra.mxu0 0.0
    %586 = vmatpush.msra.mxu0 0.0
    %587 = vmatpush.msra.mxu0 0.0
    %588 = vmatpush.msra.mxu0 0.0
    %589 = vmatpush.msra.mxu0 %v573
    %590 = vmatpush.msra.mxu0 %v249
    %591 = vmatmul.f32.gmra.mxu0 %v567
    %v592 = vpop.f32.mrf.mxu0
    %v593 = vadd.f32 %v559, %v592
    %594 = vmatmul.f32.gmra.mxu0 %v570
    %v595 = vpop.f32.mrf.mxu0
    %v596 = vadd.f32 %v564, %v595
    %597 = vdwg.mxu0
    %v598 = vld [vmem:[%s13 + $0x60] sm:$0x1]
    %v599 = vperm.slane %v598, 0
    %v600 = vadd.f32 %v593, %v599
    %v601 = vadd.f32 %v596, %v599
    %602 = vst.msk [vmem:[%s14] sm:$0xff] %vm282, %v600
    %vm603 = vcmask 259072
    %604 = vst.msk [vmem:[%s14 + $0x8] sm:$0x3f] %vm603, %v601
    %v605 = vld [vmem:[%s12 + $0x60] sm:$0xff]
    %v606 = vld [vmem:[%s12 + $0x68] sm:$0xff]
    %v607 = vld [vmem:[%s12 + $0x70] sm:$0xff]
    %v608 = vld [vmem:[%s12 + $0x78] sm:$0xff]
    %v609 = vld [vmem:[%s12 + $0x80] sm:$0xff]
    %v610 = vld [vmem:[%s12 + $0x88] sm:$0xff]
    %v611 = vld [vmem:[%s12 + $0x90] sm:$0xff]
    %v612 = vld [vmem:[%s12 + $0x98] sm:$0xff]
    %v613 = vld [vmem:[%s12 + $0xa0] sm:$0xff]
    %v614 = vld [vmem:[%s12 + $0xa8] sm:$0xff]
    %v615 = vld [vmem:[%s12 + $0xb0] sm:$0xff]
    %v616 = vld [vmem:[%s12 + $0xb8] sm:$0xff]
    %v617 = vld [vmem:[%s13 + $0x48] sm:$0x1]
    %v618 = vperm.slane %v617, 0
    %v620 = vsel %vm282, %v600, 0
    %v623 = vsel %vm282, %v601, 0
    %625 = vmatpush.msra.mxu0 0.0
    %626 = vmatpush.msra.mxu0 0.0
    %627 = vmatpush.msra.mxu0 0.0
    %628 = vmatpush.msra.mxu0 0.0
    %629 = vmatpush.msra.mxu0 0.0
    %630 = vmatpush.msra.mxu0 0.0
    %631 = vmatpush.msra.mxu0 0.0
    %632 = vmatpush.msra.mxu0 0.0
    %633 = vmatpush.msra.mxu0 0.0
    %634 = vmatpush.msra.mxu0 0.0
    %635 = vmatpush.msra.mxu0 0.0
    %636 = vmatpush.msra.mxu0 0.0
    %637 = vmatpush.msra.mxu0 %v608
    %638 = vmatpush.msra.mxu0 %v607
    %639 = vmatpush.msra.mxu0 %v606
    %640 = vmatpush.msra.mxu0 %v605
    %641 = vmatmul.f32.gmra.mxu0 %v620
    %v642 = vpop.f32.mrf.mxu0
    %v643 = vadd.f32 %v618, %v642
    %644 = vmatmul.f32.gmra.mxu0 %v623
    %v645 = vpop.f32.mrf.mxu0
    %v646 = vadd.f32 %v618, %v645
    %647 = vdwg.mxu0
    %v648 = vmax.f32 %v643, 0.0
    %v649 = vmax.f32 %v646, 0.0
    %v650 = vld [vmem:[%s13 + $0x50] sm:$0x1]
    %v651 = vperm.slane %v650, 0
    %vm652 = vcmask 523264
    %v654 = vsel %vm652, %v648, 0
    %v657 = vsel %vm652, %v649, 0
    %659 = vmatpush.msra.mxu0 0.0
    %660 = vmatpush.msra.mxu0 0.0
    %661 = vmatpush.msra.mxu0 0.0
    %662 = vmatpush.msra.mxu0 0.0
    %663 = vmatpush.msra.mxu0 0.0
    %664 = vmatpush.msra.mxu0 0.0
    %665 = vmatpush.msra.mxu0 0.0
    %666 = vmatpush.msra.mxu0 0.0
    %667 = vmatpush.msra.mxu0 %v616
    %668 = vmatpush.msra.mxu0 %v615
    %669 = vmatpush.msra.mxu0 %v614
    %670 = vmatpush.msra.mxu0 %v613
    %671 = vmatpush.msra.mxu0 %v612
    %672 = vmatpush.msra.mxu0 %v611
    %673 = vmatpush.msra.mxu0 %v610
    %674 = vmatpush.msra.mxu0 %v609
    %675 = vmatmul.f32.gmra.mxu0 %v654
    %v676 = vpop.f32.mrf.mxu0
    %v677 = vadd.f32 %v651, %v676
    %678 = vmatmul.f32.gmra.mxu0 %v657
    %v679 = vpop.f32.mrf.mxu0
    %v680 = vadd.f32 %v651, %v679
    %681 = vdwg.mxu0
    %v682 = vand.u32 2147483647, %v677
    %v683 = vand.u32 2147483647, %v680
    %v684 = vsub.f32 0.0, %v682
    %v685 = vsub.f32 0.0, %v683
    %v686 = vadd.f32 %v684, 1.0
    %v687 = vadd.f32 %v685, 1.0
    %v688 = vmul.f32 %v677, %v677
    %v689 = vmul.f32 %v680, %v680
    %692 = vrot.lane.b32.xlu0 %v688, 32
    %v693 = vpop.permute.xlu0 %692
    %694 = vrot.lane.b32.xlu0 %v689, 32
    %v695 = vpop.permute.xlu0 %694
    %v698 = vsub.f32 %v686, %v693
    %v699 = vsub.f32 %v687, %v695
    %v700 = vmul.f32 %v684, 1.442695
    %v701 = vpow.pop %v700
    %v702 = vmul.f32 %v685, 1.442695
    %v703 = vpow.pop %v702
    %v704 = vsub.f32 %v698, %v701
    %v705 = vsub.f32 %v699, %v703
    %708 = vrot.lane.b32.xlu0 %v704, 96
    %v709 = vpop.permute.xlu0 %708
    %710 = vrot.lane.b32.xlu0 %v705, 96
    %v711 = vpop.permute.xlu0 %710
    %v714 = vsel %vm282, %v709, 0.0
    %v715 = vsel %vm603, %v711, 0.0
    %v716 = vadd.f32 %v714, %v715
    %717 = vadd.xlane.f32.xlu0 %v716
    %v718 = vpop.xlane.xlu0 %717
    %v719 = vrot.slane %v718, 4
    %v720 = vadd.f32 %v718, %v719
    %v721 = vrot.slane %v720, 2
    %v722 = vadd.f32 %v720, %v721
    %v723 = vrot.slane %v722, 1
    %v724 = vadd.f32 %v722, %v723
    %s725 = vtos %v724
    %s726 = smul.f32 %s725, -0.5
    %s727 = smul.f32 %s726, 5e-05
    %v728 = vmul.f32 %v684, 0.5
    %v729 = vmul.f32 %v685, 0.5
    %v730 = vmul.f32 %v728, 1.442695
    %v731 = vpow.pop %v730
    %v732 = vmul.f32 %v729, 1.442695
    %v733 = vpow.pop %v732
    %v734 = vld [vmem:[%s9] sm:$0xff]
    %v735 = vld [vmem:[%s9 + $0x8] sm:$0x3f]
    %738 = vrot.lane.b32.xlu0 %v734, 32
    %v739 = vpop.permute.xlu0 %738
    %740 = vrot.lane.b32.xlu0 %v735, 32
    %v741 = vpop.permute.xlu0 %740
    %v744 = vmul.f32 %v731, %v739
    %v745 = vmul.f32 %v733, %v741
    %748 = vrot.lane.b32.xlu0 %v744, 96
    %v749 = vpop.permute.xlu0 %748
    %750 = vrot.lane.b32.xlu0 %v745, 96
    %v751 = vpop.permute.xlu0 %750
    %v754 = vadd.f32 %v677, %v749
    %v755 = vadd.f32 %v680, %v751
    %v756 = vld [vmem:[%s12 + $0x40] sm:$0xff]
    %v757 = vld [vmem:[%s12 + $0x48] sm:$0xff]
    %v758 = vld [vmem:[%s12 + $0x50] sm:$0xff]
    %v759 = vld [vmem:[%s12 + $0x58] sm:$0xff]
    %v760 = vld [vmem:[%s7] sm:$0x3]
    %v761 = vld [vmem:[%s13 + $0x58] sm:$0x1]
    %v762 = vperm.slane %v761, 0
    %v764 = vsel %vm282, %v760, 0
    %766 = vmatpush.msra.mxu0 0.0
    %767 = vmatpush.msra.mxu0 0.0
    %768 = vmatpush.msra.mxu0 0.0
    %769 = vmatpush.msra.mxu0 0.0
    %770 = vmatpush.msra.mxu0 0.0
    %771 = vmatpush.msra.mxu0 0.0
    %772 = vmatpush.msra.mxu0 0.0
    %773 = vmatpush.msra.mxu0 0.0
    %774 = vmatpush.msra.mxu0 0.0
    %775 = vmatpush.msra.mxu0 0.0
    %776 = vmatpush.msra.mxu0 0.0
    %777 = vmatpush.msra.mxu0 0.0
    %778 = vmatpush.msra.mxu0 %v759
    %779 = vmatpush.msra.mxu0 %v758
    %780 = vmatpush.msra.mxu0 %v757
    %781 = vmatpush.msra.mxu0 %v756
    %782 = vmatmul.f32.gmra.mxu0 %v764
    %v783 = vpop.f32.mrf.mxu0
    %v784 = vadd.f32 %v762, %v783
    %785 = vdwg.mxu0
    %v786 = vld [vmem:[%s6] sm:$0xff]
    %v787 = vld [vmem:[%s6 + $0x8] sm:$0x3f]
    %v788 = vld [vmem:[%s8] sm:$0x3]
    %790 = vset.pattern.permute.xlu0 0
    %791 = vperm.xlu0 %790, %v788
    %v792 = vpop.permute.xlu0 %791
    %v794 = vadd.f32 %v784, %v792
    %vm795 = vcmask 15360
    %v797 = vsel %vm795, %v786, 0
    %v800 = vsel %vm795, %v787, 0
    %vm802 = vcmask 1041408
    %v804 = vsel %vm802, %v794, 0
    %806 = vmatpush.msra.mxu0 0.0
    %807 = vmatpush.msra.mxu0 0.0
    %808 = vmatpush.msra.mxu0 0.0
    %809 = vmatpush.msra.mxu0 0.0
    %810 = vmatpush.msra.mxu0 0.0
    %811 = vmatpush.msra.mxu0 0.0
    %812 = vmatpush.msra.mxu0 0.0
    %813 = vmatpush.msra.mxu0 0.0
    %814 = vmatpush.msra.mxu0 0.0
    %815 = vmatpush.msra.mxu0 0.0
    %816 = vmatpush.msra.mxu0 0.0
    %817 = vmatpush.msra.mxu0 0.0
    %818 = vmatpush.msra.mxu0 0.0
    %819 = vmatpush.msra.mxu0 0.0
    %820 = vmatpush.msra.mxu0 0.0
    %821 = vmatpush.msra.mxu0 %v804
    %822 = vmatmul.f32.gmra.mxu0 %v797
    %v823 = vpop.f32.mrf.mxu0
    %v824 = vadd.f32 0.0, %v823
    %825 = vmatmul.f32.gmra.mxu0 %v800
    %v826 = vpop.f32.mrf.mxu0
    %v827 = vadd.f32 0.0, %v826
    %828 = vdwg.mxu0
    %v829 = vadd.f32 %v754, %v824
    %v830 = vadd.f32 %v755, %v827
    %831 = vst.msk [vmem:[%s15] sm:$0xff] %vm282, %v829
    %832 = vst.msk [vmem:[%s15 + $0x8] sm:$0x3f] %vm603, %v830
    %s833 = scalar_lea.smem [#allocation5], 0
    %834 = sst [smem:[%s833]] %s727
    // Predicated region
    $region58: #{encoder_forward.1} parent=1 // pred_check
      _
    $region59: #{encoder_forward.1} parent=1 // pred_check_branch
      %836 = sbr.rel (0) target = $region61
    $region60: #{encoder_forward.1} parent=1 // pred_region
      _
    $region61: #{encoder_forward.1} parent=1 // pred_fallthru
      _
    // Predicated region
    $region62: #{encoder_forward.1} parent=1 // pred_check
      _
    $region63: #{encoder_forward.1} parent=1 // pred_check_branch
      %838 = sbr.rel (0) target = $region65
    $region64: #{encoder_forward.1} parent=1 // pred_region
      _
    $region65: #{encoder_forward.1} parent=1 // pred_fallthru
      _
    // Predicated region
    $region66: #{encoder_forward.1} parent=1 // pred_check
      _
    $region67: #{encoder_forward.1} parent=1 // pred_check_branch
      %840 = sbr.rel (0) target = $region69
    $region68: #{encoder_forward.1} parent=1 // pred_region
      %842 = vsyncadd [#allocation3], 0
      %s844 = sshll.u32 [#allocation2], 4
      %s845 = int_to_ptr.vmem [resolvable:$true] %s844
      %s846 = sshll.u32 %s16, 4
      %s847 = int_to_ptr.hbm [resolvable:$true] %s846
      %849 = dma.vmem_to_hbm [thread:$0]  %s845, 32, %s847, [#allocation3]
    $region69: #{encoder_forward.1} parent=1 // pred_fallthru
      _
    // Predicated region
    $region70: #{encoder_forward.1} parent=1 // pred_check
      _
    $region71: #{encoder_forward.1} parent=1 // pred_check_branch
      %851 = sbr.rel (0) target = $region73
    $region72: #{encoder_forward.1} parent=1 // pred_region
      %853 = vsyncadd [#allocation4], 0
      %s855 = sshll.u32 %s17, 4
      %s856 = int_to_ptr.hbm [resolvable:$true] %s855
      %858 = dma.smem_to_hbm [#allocation5], 16, %s856, [#allocation4]
    $region73: #{encoder_forward.1} parent=1 // pred_fallthru
      _
    // Predicated region
    $region74: #{encoder_forward.1} parent=1 // pred_check
      _
    $region75: #{encoder_forward.1} parent=1 // pred_check_branch
      %860 = sbr.rel (0) target = $region77
    $region76: #{encoder_forward.1} parent=1 // pred_region
      _
    $region77: #{encoder_forward.1} parent=1 // pred_fallthru
      _
    // Predicated region
    $region78: #{encoder_forward.1} parent=1 // pred_check
      _
    $region79: #{encoder_forward.1} parent=1 // pred_check_branch
      %862 = sbr.rel (0) target = $region81
    $region80: #{encoder_forward.1} parent=1 // pred_region
      _
    $region81: #{encoder_forward.1} parent=1 // pred_fallthru
      _
    // Predicated region
    $region82: #{encoder_forward.1} parent=1 // pred_check
      _
    $region83: #{encoder_forward.1} parent=1 // pred_check_branch
      %864 = sbr.rel (0) target = $region85
    $region84: #{encoder_forward.1} parent=1 // pred_region
      %866 = dma.done [#allocation3], 32
    $region85: #{encoder_forward.1} parent=1 // pred_fallthru
      _
    // Predicated region
    $region86: #{encoder_forward.1} parent=1 // pred_check
      _
    $region87: #{encoder_forward.1} parent=1 // pred_check_branch
      %868 = sbr.rel (0) target = $region89
    $region88: #{encoder_forward.1} parent=1 // pred_region
      %870 = dma.done [#allocation4], 16
    $region89: #{encoder_forward.1} parent=1 // pred_fallthru
      _
    %871 = sfence
    %872 = vsyncpa [#allocation3], 1
    %873 = vsyncpa [#allocation4], 1

</llo_original>
